<compile_context>
chip_gen: v5e
topology: v5e:2x2
jax: 0.10.0
libtpu: 0.0.40
codegen_flags: <defaults>
</compile_context>

<pallas_src>
import functools

import jax
import jax.numpy as jnp
from jax.experimental import pallas as pl
from jax.experimental.pallas import tpu as pltpu


# ---------------------------------------------------------------------------
# helpers
# ---------------------------------------------------------------------------
def _round_up(n: int, m: int) -> int:
    return ((n + m - 1) // m) * m


def _pad2(a, rows: int, cols: int):
    return jnp.pad(a, ((0, rows - a.shape[0]), (0, cols - a.shape[1])))


# ---------------------------------------------------------------------------
# kernel
# ---------------------------------------------------------------------------
def _make_kernel(h_pad: int, s_pad: int):
    def kernel(x_ref, w1_ref, w2_ref, w3_ref, w4_ref, b_ref, out_ref):
        dot_dt = w1_ref.dtype                     # bf16 (or f32) MXU operand dtype
        b = b_ref[...]                            # (4, MAXF) float32, packed biases

        # x = fc1(tanh(x))
        h = jnp.tanh(x_ref[...])                                        # f32 EUP
        h = jnp.dot(h.astype(dot_dt), w1_ref[...],
                    preferred_element_type=jnp.float32) + b[0:1, :h_pad]
        # x = fc2(tanh(x))
        h = jnp.tanh(h)
        h = jnp.dot(h.astype(dot_dt), w2_ref[...],
                    preferred_element_type=jnp.float32) + b[1:2, :h_pad]
        # x = fc3(tanh(x))
        h = jnp.tanh(h)
        h = jnp.dot(h.astype(dot_dt), w3_ref[...],
                    preferred_element_type=jnp.float32) + b[2:3, :h_pad]
        # x = fc4(x)   (no activation)
        h = jnp.dot(h.astype(dot_dt), w4_ref[...],
                    preferred_element_type=jnp.float32) + b[3:4, :s_pad]

        out_ref[...] = h.astype(out_ref.dtype)

    return kernel


# ---------------------------------------------------------------------------
# host-side parameter packing (done once): pad to 128 lanes, cast, pack biases
# ---------------------------------------------------------------------------
def pack_params(params, dot_dtype=jnp.bfloat16):
    inputs = params["w1"].shape[0]
    hidden = params["w1"].shape[1]
    states = params["w4"].shape[1]

    in_p = _round_up(inputs, 128)
    h_p = _round_up(hidden, 128)
    s_p = _round_up(states, 128)
    maxf = max(h_p, s_p)

    w1 = _pad2(params["w1"], in_p, h_p).astype(dot_dtype)
    w2 = _pad2(params["w2"], h_p, h_p).astype(dot_dtype)
    w3 = _pad2(params["w3"], h_p, h_p).astype(dot_dtype)
    w4 = _pad2(params["w4"], h_p, s_p).astype(dot_dtype)

    b_stack = jnp.zeros((4, maxf), jnp.float32)
    b_stack = b_stack.at[0, :hidden].set(params["b1"][0])
    b_stack = b_stack.at[1, :hidden].set(params["b2"][0])
    b_stack = b_stack.at[2, :hidden].set(params["b3"][0])
    b_stack = b_stack.at[3, :states].set(params["b4"][0])

    dims = dict(inputs=inputs, hidden=hidden, states=states,
                in_p=in_p, h_p=h_p, s_p=s_p, maxf=maxf)
    return dict(w1=w1, w2=w2, w3=w3, w4=w4, b=b_stack, dims=dims)


# ---------------------------------------------------------------------------
# forward pass
# ---------------------------------------------------------------------------
def transition_model_forward(x, packed, *, tile_b=None):
    """Run the TransitionModel forward pass as a Pallas TPU kernel.

    x:      [B, inputs] float32
    packed: output of pack_params (padded bf16 weights, packed f32 biases)
    """
    d = packed["dims"]
    inputs, states = d["inputs"], d["states"]
    in_p, h_p, s_p, maxf = d["in_p"], d["h_p"], d["s_p"], d["maxf"]

    B = x.shape[0]
    assert x.shape[1] == inputs

    # Pad batch to a multiple of 16 (8-sublane alignment + >=2 grid steps / 2 TCs).
    B_pad = _round_up(max(B, 16), 16)
    x_pad = _pad2(x.astype(jnp.float32), B_pad, in_p)

    if tile_b is None:
        # Large 8-aligned tiles, but at least 2 grid steps so v7x's two
        # TensorCores both get work.  For real streaming batches this lands
        # at 512-row tiles.
        tile_b = min(512, max(8, B_pad // 2))
        while (B_pad % tile_b) or (tile_b % 8):
            tile_b -= 8
    assert tile_b % 8 == 0, "tile_b must be a multiple of 8 (sublane tiling)"
    assert B_pad % tile_b == 0, "padded batch must be divisible by tile_b"

    grid = (B_pad // tile_b,)

    # Replicated operands (constant index_map) -> single-buffered.
    def const_spec(shape):
        return pl.BlockSpec(shape, lambda i: (0, 0),
                            pipeline_mode=pl.Buffered(1))

    in_specs = [
        pl.BlockSpec((tile_b, in_p), lambda i: (i, 0)),   # x tile (double-buffered)
        const_spec(packed["w1"].shape),
        const_spec(packed["w2"].shape),
        const_spec(packed["w3"].shape),
        const_spec(packed["w4"].shape),
        const_spec(packed["b"].shape),
    ]
    out_specs = pl.BlockSpec((tile_b, s_p), lambda i: (i, 0))

    # --- cost estimate (helps XLA schedule around this tiny custom call) ----
    matmul_flops = 2 * B_pad * (in_p * h_p + 2 * h_p * h_p + h_p * s_p)
    tanh_count = B_pad * (in_p + 2 * h_p)
    w_bytes = sum(int(packed[k].size) * packed[k].dtype.itemsize
                  for k in ("w1", "w2", "w3", "w4"))
    b_bytes = int(packed["b"].size) * 4
    bytes_accessed = int(x_pad.size) * 4 + w_bytes + b_bytes + B_pad * s_p * 4
    cost = pl.CostEstimate(flops=matmul_flops,
                           transcendentals=tanh_count,
                           bytes_accessed=bytes_accessed)

    # --- VMEM budget: single-buffered weights/bias + double-buffered x/out
    #     tiles + f32 intermediates, with 2x headroom (sized well under the
    #     64 MiB physical VMEM of v7x). -------------------------------------
    vmem_est = (w_bytes + b_bytes
                + 2 * tile_b * in_p * 4          # x tile, double-buffered
                + 2 * tile_b * s_p * 4           # out tile, double-buffered
                + 4 * tile_b * maxf * 4)         # intermediates
    vmem_limit = int(max(32 * 1024 * 1024, 2 * vmem_est))

    out_pad = pl.pallas_call(
        _make_kernel(h_p, s_p),
        out_shape=jax.ShapeDtypeStruct((B_pad, s_p), jnp.float32),
        grid_spec=pltpu.PrefetchScalarGridSpec(
            num_scalar_prefetch=0,
            grid=grid,
            in_specs=in_specs,
            out_specs=out_specs,
        ),
        compiler_params=pltpu.CompilerParams(
            dimension_semantics=("parallel",),
            vmem_limit_bytes=vmem_limit,
        ),
        cost_estimate=cost,
    )(x_pad, packed["w1"], packed["w2"], packed["w3"], packed["w4"], packed["b"])

    # Strip batch / lane padding outside the kernel.
    return out_pad[:B, :states]


# ---------------------------------------------------------------------------
# parameter init + references
# ---------------------------------------------------------------------------
def init_params(key, inputs, hidden, states):
    """Deterministic synthetic parameter init (shapes match nn.Linear layers).

    Torch nn.Linear stores W as [out, in]; we store the transpose [in, out]
    so the kernel can compute x @ W + b directly.
    """
    keys = jax.random.split(key, 8)

    def lin(kw, kb, fan_in, fan_out):
        bound = 1.0 / jnp.sqrt(fan_in)
        w = jax.random.uniform(kw, (fan_in, fan_out), jnp.float32, -bound, bound)
        b = jax.random.uniform(kb, (1, fan_out), jnp.float32, -bound, bound)
        return w, b

    w1, b1 = lin(keys[0], keys[1], inputs, hidden)
    w2, b2 = lin(keys[2], keys[3], hidden, hidden)
    w3, b3 = lin(keys[4], keys[5], hidden, hidden)
    w4, b4 = lin(keys[6], keys[7], hidden, states)
    return dict(w1=w1, b1=b1, w2=w2, b2=b2, w3=w3, b3=b3, w4=w4, b4=b4)


def reference_forward(x, p, dot_dtype=jnp.float32):
    """Pure-JAX reference. dot_dtype=bfloat16 mimics the kernel's MXU casting."""
    def lin(h, w, b):
        return jnp.dot(h.astype(dot_dtype), w.astype(dot_dtype),
                       preferred_element_type=jnp.float32) + b
    h = lin(jnp.tanh(x), p["w1"], p["b1"])
    h = lin(jnp.tanh(h), p["w2"], p["b2"])
    h = lin(jnp.tanh(h), p["w3"], p["b3"])
    return lin(h, p["w4"], p["b4"])


# TODO(synk): save_model/load_model (torch checkpoint I/O) are host-side and
# have no Pallas equivalent; only the forward pass is implemented here.

if __name__ == "__main__":
    inputs, hidden, states = 16, 32, 8
    batch = 64  # padded/tiled internally; grid gets >= 2 steps

    key = jax.random.PRNGKey(0)
    k_x, k_p = jax.random.split(key)
    x = jax.random.normal(k_x, (batch, inputs), dtype=jnp.float32)
    params = init_params(k_p, inputs, hidden, states)

    packed = pack_params(params, dot_dtype=jnp.bfloat16)
    out = transition_model_forward(x, packed)
    out = jax.block_until_ready(out)

    assert out.shape == (batch, states)

    # Tight check vs a reference that uses the same bf16 MXU operands.
    ref_bf16 = reference_forward(x, params, dot_dtype=jnp.bfloat16)
    assert jnp.allclose(out, ref_bf16, atol=1e-3, rtol=1e-3), "mismatch vs bf16 reference"

    # Loose sanity check vs the exact float32 semantics of the torch module.
    ref_f32 = reference_forward(x, params, dot_dtype=jnp.float32)
    assert jnp.allclose(out, ref_f32, atol=5e-2, rtol=5e-2), "mismatch vs f32 reference"

    print("KERNEL_OK")
</pallas_src>

<mosaic_0001>
module attributes {stable_mosaic.version = 11 : i64} {
  func.func @kernel(%arg0: i32, %arg1: memref<32x128xf32, #tpu.memory_space<vmem>>, %arg2: memref<128x128xbf16, #tpu.memory_space<vmem>>, %arg3: memref<128x128xbf16, #tpu.memory_space<vmem>>, %arg4: memref<128x128xbf16, #tpu.memory_space<vmem>>, %arg5: memref<128x128xbf16, #tpu.memory_space<vmem>>, %arg6: memref<4x128xf32, #tpu.memory_space<vmem>>, %arg7: memref<32x128xf32, #tpu.memory_space<vmem>>) attributes {dimension_semantics = [#tpu.dimension_semantics<parallel>], iteration_bounds = array<i64: 2>, scalar_prefetch = 0 : i64, scratch_operands = 0 : i64, tpu.core_type = #tpu.core_type<tc>, window_params = [{transform_indices = @transform_0, window_bounds = array<i64: 32, 128>}, {pipeline_mode = #tpu.pipeline_mode<synchronous>, transform_indices = @transform_1, window_bounds = array<i64: 128, 128>}, {pipeline_mode = #tpu.pipeline_mode<synchronous>, transform_indices = @transform_2, window_bounds = array<i64: 128, 128>}, {pipeline_mode = #tpu.pipeline_mode<synchronous>, transform_indices = @transform_3, window_bounds = array<i64: 128, 128>}, {pipeline_mode = #tpu.pipeline_mode<synchronous>, transform_indices = @transform_4, window_bounds = array<i64: 128, 128>}, {pipeline_mode = #tpu.pipeline_mode<synchronous>, transform_indices = @transform_5, window_bounds = array<i64: 4, 128>}, {transform_indices = @transform_6, window_bounds = array<i64: 32, 128>}]} {
    %c0 = arith.constant 0 : index
    %c0_0 = arith.constant 0 : index
    %0 = vector.load %arg6[%c0, %c0_0] : memref<4x128xf32, #tpu.memory_space<vmem>>, vector<4x128xf32>
    %c0_1 = arith.constant 0 : index
    %c0_2 = arith.constant 0 : index
    %1 = vector.load %arg1[%c0_1, %c0_2] : memref<32x128xf32, #tpu.memory_space<vmem>>, vector<32x128xf32>
    %2 = math.tanh %1 : vector<32x128xf32>
    %3 = arith.truncf %2 : vector<32x128xf32> to vector<32x128xbf16>
    %c0_3 = arith.constant 0 : index
    %c0_4 = arith.constant 0 : index
    %4 = vector.load %arg2[%c0_3, %c0_4] : memref<128x128xbf16, #tpu.memory_space<vmem>>, vector<128x128xbf16>
    %cst = arith.constant dense<0.000000e+00> : vector<32x128xf32>
    %5 = tpu.matmul %3, %4, %cst {dimension_numbers = #tpu.dot_dimension_numbers<[1], [0], [0], [1], [0, 0, 1, 1], [], []>} : vector<32x128xbf16>, vector<128x128xbf16>, vector<32x128xf32> -> vector<32x128xf32>
    %6 = vector.extract_strided_slice %0 {offsets = [0, 0], sizes = [1, 128], strides = [1, 1]} : vector<4x128xf32> to vector<1x128xf32>
    %7 = vector.broadcast %6 : vector<1x128xf32> to vector<32x128xf32>
    %8 = arith.addf %5, %7 : vector<32x128xf32>
    %9 = math.tanh %8 : vector<32x128xf32>
    %10 = arith.truncf %9 : vector<32x128xf32> to vector<32x128xbf16>
    %c0_5 = arith.constant 0 : index
    %c0_6 = arith.constant 0 : index
    %11 = vector.load %arg3[%c0_5, %c0_6] : memref<128x128xbf16, #tpu.memory_space<vmem>>, vector<128x128xbf16>
    %cst_7 = arith.constant dense<0.000000e+00> : vector<32x128xf32>
    %12 = tpu.matmul %10, %11, %cst_7 {dimension_numbers = #tpu.dot_dimension_numbers<[1], [0], [0], [1], [0, 0, 1, 1], [], []>} : vector<32x128xbf16>, vector<128x128xbf16>, vector<32x128xf32> -> vector<32x128xf32>
    %13 = vector.extract_strided_slice %0 {offsets = [1, 0], sizes = [1, 128], strides = [1, 1]} : vector<4x128xf32> to vector<1x128xf32>
    %14 = vector.broadcast %13 : vector<1x128xf32> to vector<32x128xf32>
    %15 = arith.addf %12, %14 : vector<32x128xf32>
    %16 = math.tanh %15 : vector<32x128xf32>
    %17 = arith.truncf %16 : vector<32x128xf32> to vector<32x128xbf16>
    %c0_8 = arith.constant 0 : index
    %c0_9 = arith.constant 0 : index
    %18 = vector.load %arg4[%c0_8, %c0_9] : memref<128x128xbf16, #tpu.memory_space<vmem>>, vector<128x128xbf16>
    %cst_10 = arith.constant dense<0.000000e+00> : vector<32x128xf32>
    %19 = tpu.matmul %17, %18, %cst_10 {dimension_numbers = #tpu.dot_dimension_numbers<[1], [0], [0], [1], [0, 0, 1, 1], [], []>} : vector<32x128xbf16>, vector<128x128xbf16>, vector<32x128xf32> -> vector<32x128xf32>
    %20 = vector.extract_strided_slice %0 {offsets = [2, 0], sizes = [1, 128], strides = [1, 1]} : vector<4x128xf32> to vector<1x128xf32>
    %21 = vector.broadcast %20 : vector<1x128xf32> to vector<32x128xf32>
    %22 = arith.addf %19, %21 : vector<32x128xf32>
    %23 = arith.truncf %22 : vector<32x128xf32> to vector<32x128xbf16>
    %c0_11 = arith.constant 0 : index
    %c0_12 = arith.constant 0 : index
    %24 = vector.load %arg5[%c0_11, %c0_12] : memref<128x128xbf16, #tpu.memory_space<vmem>>, vector<128x128xbf16>
    %cst_13 = arith.constant dense<0.000000e+00> : vector<32x128xf32>
    %25 = tpu.matmul %23, %24, %cst_13 {dimension_numbers = #tpu.dot_dimension_numbers<[1], [0], [0], [1], [0, 0, 1, 1], [], []>} : vector<32x128xbf16>, vector<128x128xbf16>, vector<32x128xf32> -> vector<32x128xf32>
    %26 = vector.extract_strided_slice %0 {offsets = [3, 0], sizes = [1, 128], strides = [1, 1]} : vector<4x128xf32> to vector<1x128xf32>
    %27 = vector.broadcast %26 : vector<1x128xf32> to vector<32x128xf32>
    %28 = arith.addf %25, %27 : vector<32x128xf32>
    %c0_14 = arith.constant 0 : index
    %c0_15 = arith.constant 0 : index
    %29 = vector.load %arg7[%c0_14, %c0_15] : memref<32x128xf32, #tpu.memory_space<vmem>>, vector<32x128xf32>
    tpu.vector_store %arg7[%c0_14, %c0_15], %28 {strides = array<i32>} : memref<32x128xf32, #tpu.memory_space<vmem>>, vector<32x128xf32>,
    return
  }
  func.func @transform_0(%arg0: i32) -> (i32, i32) {
    %c0_i32 = arith.constant 0 : i32
    %c0_i32_0 = arith.constant 0 : i32
    return %arg0, %c0_i32 : i32, i32
  }
  func.func @transform_1(%arg0: i32) -> (i32, i32) {
    %c0_i32 = arith.constant 0 : i32
    %c0_i32_0 = arith.constant 0 : i32
    %c0_i32_1 = arith.constant 0 : i32
    return %c0_i32, %c0_i32_0 : i32, i32
  }
  func.func @transform_2(%arg0: i32) -> (i32, i32) {
    %c0_i32 = arith.constant 0 : i32
    %c0_i32_0 = arith.constant 0 : i32
    %c0_i32_1 = arith.constant 0 : i32
    return %c0_i32, %c0_i32_0 : i32, i32
  }
  func.func @transform_3(%arg0: i32) -> (i32, i32) {
    %c0_i32 = arith.constant 0 : i32
    %c0_i32_0 = arith.constant 0 : i32
    %c0_i32_1 = arith.constant 0 : i32
    return %c0_i32, %c0_i32_0 : i32, i32
  }
  func.func @transform_4(%arg0: i32) -> (i32, i32) {
    %c0_i32 = arith.constant 0 : i32
    %c0_i32_0 = arith.constant 0 : i32
    %c0_i32_1 = arith.constant 0 : i32
    return %c0_i32, %c0_i32_0 : i32, i32
  }
  func.func @transform_5(%arg0: i32) -> (i32, i32) {
    %c0_i32 = arith.constant 0 : i32
    %c0_i32_0 = arith.constant 0 : i32
    %c0_i32_1 = arith.constant 0 : i32
    return %c0_i32, %c0_i32_0 : i32, i32
  }
  func.func @transform_6(%arg0: i32) -> (i32, i32) {
    %c0_i32 = arith.constant 0 : i32
    %c0_i32_0 = arith.constant 0 : i32
    return %arg0, %c0_i32 : i32, i32
  }
}

</mosaic_0001>

<llo_original>
// kernel: tpu_custom_call.1
$region0: #{tpu_custom_call.1}
  #allocation0 [shape = 'u32[]', space=smem, size = 0x4, offset = 0x4, fixed_abs, tag = 'smem constant byte address 0x4 - core index']
  #allocation1 [shape = 'u32[72,128]{1,0:T(1,128)}', space=vmem, size = 0x9000, scoped, tag = 'internal scratch']
  %s0 = inlined_call_operand.hbm [shape: f32[64,128], index: 0, kind: input, shape index: {}]
  %s1 = inlined_call_operand.hbm [shape: bf16[128,128], index: 1, kind: input, shape index: {}]
  %s2 = inlined_call_operand.hbm [shape: bf16[128,128], index: 2, kind: input, shape index: {}]
  %s3 = inlined_call_operand.hbm [shape: bf16[128,128], index: 3, kind: input, shape index: {}]
  %s4 = inlined_call_operand.hbm [shape: bf16[128,128], index: 4, kind: input, shape index: {}]
  %s5 = inlined_call_operand.vmem [shape: f32[4,128], index: 5, kind: input, shape index: {}]
  %s6 = inlined_call_operand.hbm [shape: f32[64,128], index: 6, kind: output, shape index: {}]
  %s7 = sld [smem:[#allocation0]]
  $region77: #{tpu_custom_call.1} parent=0
    _
  %s9 = ssub.s32 1, %s7
  %s10 = scalar_select 0, %s9, %s7
  $region1: #{tpu_custom_call.1} parent=0
    #allocation2 [shape = 'u8[32768]{0}', space=vmem, size = 0x8000, scoped, tag = 'input window, operand 0']
    #allocation3 [shape = 's32[2]{0}', space=sflag, size = 0x8, scoped, tag = 'scoped memory for tpu_custom_call.1']
    #allocation4 [shape = 's32[2]{0}', space=sflag, size = 0x8, scoped, tag = 'scoped memory for tpu_custom_call.1']
    #allocation5 [shape = 'u8[32768]{0}', space=vmem, size = 0x8000, scoped, tag = 'input window, operand 1, single buffered']
    #allocation6 [shape = 's32[1]{0}', space=sflag, size = 0x4, scoped, tag = 'scoped memory for tpu_custom_call.1']
    #allocation7 [shape = 'u8[32768]{0}', space=vmem, size = 0x8000, scoped, tag = 'input window, operand 2, single buffered']
    #allocation8 [shape = 'u8[32768]{0}', space=vmem, size = 0x8000, scoped, tag = 'input window, operand 3, single buffered']
    #allocation9 [shape = 's32[1]{0}', space=sflag, size = 0x4, scoped, tag = 'scoped memory for tpu_custom_call.1']
    #allocation10 [shape = 'u8[32768]{0}', space=vmem, size = 0x8000, scoped, tag = 'input window, operand 4, single buffered']
    #allocation11 [shape = 'u8[32768]{0}', space=vmem, size = 0x8000, scoped, tag = 'output window, operand 0']
    %11 = vsyncpa [#allocation3], 0
    %s12 = scalar_lea.sflag [#allocation3], 1
    %13 = vsyncpa %s12, 0
    %14 = vsyncpa [#allocation6], 0
    %15 = vsyncpa [#allocation9], 0
    %16 = vsyncpa [#allocation4], 0
    %s17 = scalar_lea.sflag [#allocation4], 1
    %18 = vsyncpa %s17, 0
    loop: start=0, step=1, limit=4
    $region2: #{tpu_custom_call.1} parent=1 // loop_pre_header
      _
    $region3: #{tpu_custom_call.1} parent=1 // loop_header
      %s20 = sphi 0, %s24
      %p21 = scmp.ge.s32.totalorder %s20, 4
      %s30 = sphi 0, %s32
      %s33 = sphi 0, %s30
      %s34 = sphi 0, %s33
      %s50 = sphi 0, %s34
      %s54 = sphi 0, %s54
      %s56 = sphi 0, %s54
      %s57 = sphi 0, %s56
      %s71 = sphi 0, %s57
      %s75 = sphi 0, %s75
      %s77 = sphi 0, %s75
      %s78 = sphi 0, %s77
      %s92 = sphi 0, %s78
      %s96 = sphi 0, %s96
      %s98 = sphi 0, %s96
      %s99 = sphi 0, %s98
      %s113 = sphi 0, %s99
      %s117 = sphi 0, %s117
      %s119 = sphi 0, %s117
      %s120 = sphi 0, %s119
      %s134 = sphi 0, %s120
      %s138 = sphi 0, %s138
      %s140 = sphi 0, %s138
      %s141 = sphi 0, %s140
      %s155 = sphi 0, %s141
      %s161 = sphi 0, %s163
      %s164 = sphi 0, %s161
      %s165 = sphi 0, %s164
      %s181 = sphi 0, %s165
    $region4: #{tpu_custom_call.1} parent=1 // loop_header_branch
      %23 = sbr.rel (%p21) target = $region8
    $region5: #{tpu_custom_call.1} parent=1 // loop_body
      %s25 = ssub.s32 %s20, 1
      %s26 = ssub.s32 %s20, 2
      %s27 = sadd.s32 %s20, 1
      %s28 = ssub.s32 %s20, %s27
      %p29 = scmp.eq.s32.totalorder %s28, 0
      %s31 = sadd.s32 %s30, 1
      %s32 = scalar_select %p29, %s30, %s31
      %p35 = pneg %p29
      %p36 = scmp.eq.s32.totalorder %s20, 1
      %p37 = por %p35, %p36
      %p38 = scmp.ne.s32.totalorder %s30, %s33
      %p39 = scmp.eq.s32.totalorder %s20, 0
      %p40 = por %p38, %p39
      %p41 = scmp.ne.s32.totalorder %s30, %s33
      %p42 = scmp.eq.s32.totalorder %s25, 1
      %p43 = por %p41, %p42
      %p44 = scmp.ne.s32.totalorder %s33, %s34
      %p45 = scmp.eq.s32.totalorder %s25, 0
      %p46 = por %p44, %p45
      %p47 = scmp.ne.s32.totalorder %s33, %s34
      %p48 = scmp.eq.s32.totalorder %s26, 1
      %p49 = por %p47, %p48
      %p51 = scmp.ne.s32.totalorder %s34, %s50
      %p52 = scmp.eq.s32.totalorder %s26, 0
      %p53 = por %p51, %p52
      %s55 = sadd.s32 %s54, 1
      %p58 = scmp.eq.s32.totalorder %s20, 1
      %p59 = scmp.ne.s32.totalorder %s54, %s56
      %p60 = scmp.eq.s32.totalorder %s20, 0
      %p61 = por %p59, %p60
      %p62 = scmp.ne.s32.totalorder %s54, %s56
      %p63 = scmp.eq.s32.totalorder %s25, 1
      %p64 = por %p62, %p63
      %p65 = scmp.ne.s32.totalorder %s56, %s57
      %p66 = scmp.eq.s32.totalorder %s25, 0
      %p67 = por %p65, %p66
      %p68 = scmp.ne.s32.totalorder %s56, %s57
      %p69 = scmp.eq.s32.totalorder %s26, 1
      %p70 = por %p68, %p69
      %p72 = scmp.ne.s32.totalorder %s57, %s71
      %p73 = scmp.eq.s32.totalorder %s26, 0
      %p74 = por %p72, %p73
      %s76 = sadd.s32 %s75, 1
      %p79 = scmp.eq.s32.totalorder %s20, 1
      %p80 = scmp.ne.s32.totalorder %s75, %s77
      %p81 = scmp.eq.s32.totalorder %s20, 0
      %p82 = por %p80, %p81
      %p83 = scmp.ne.s32.totalorder %s75, %s77
      %p84 = scmp.eq.s32.totalorder %s25, 1
      %p85 = por %p83, %p84
      %p86 = scmp.ne.s32.totalorder %s77, %s78
      %p87 = scmp.eq.s32.totalorder %s25, 0
      %p88 = por %p86, %p87
      %p89 = scmp.ne.s32.totalorder %s77, %s78
      %p90 = scmp.eq.s32.totalorder %s26, 1
      %p91 = por %p89, %p90
      %p93 = scmp.ne.s32.totalorder %s78, %s92
      %p94 = scmp.eq.s32.totalorder %s26, 0
      %p95 = por %p93, %p94
      %s97 = sadd.s32 %s96, 1
      %p100 = scmp.eq.s32.totalorder %s20, 1
      %p101 = scmp.ne.s32.totalorder %s96, %s98
      %p102 = scmp.eq.s32.totalorder %s20, 0
      %p103 = por %p101, %p102
      %p104 = scmp.ne.s32.totalorder %s96, %s98
      %p105 = scmp.eq.s32.totalorder %s25, 1
      %p106 = por %p104, %p105
      %p107 = scmp.ne.s32.totalorder %s98, %s99
      %p108 = scmp.eq.s32.totalorder %s25, 0
      %p109 = por %p107, %p108
      %p110 = scmp.ne.s32.totalorder %s98, %s99
      %p111 = scmp.eq.s32.totalorder %s26, 1
      %p112 = por %p110, %p111
      %p114 = scmp.ne.s32.totalorder %s99, %s113
      %p115 = scmp.eq.s32.totalorder %s26, 0
      %p116 = por %p114, %p115
      %s118 = sadd.s32 %s117, 1
      %p121 = scmp.eq.s32.totalorder %s20, 1
      %p122 = scmp.ne.s32.totalorder %s117, %s119
      %p123 = scmp.eq.s32.totalorder %s20, 0
      %p124 = por %p122, %p123
      %p125 = scmp.ne.s32.totalorder %s117, %s119
      %p126 = scmp.eq.s32.totalorder %s25, 1
      %p127 = por %p125, %p126
      %p128 = scmp.ne.s32.totalorder %s119, %s120
      %p129 = scmp.eq.s32.totalorder %s25, 0
      %p130 = por %p128, %p129
      %p131 = scmp.ne.s32.totalorder %s119, %s120
      %p132 = scmp.eq.s32.totalorder %s26, 1
      %p133 = por %p131, %p132
      %p135 = scmp.ne.s32.totalorder %s120, %s134
      %p136 = scmp.eq.s32.totalorder %s26, 0
      %p137 = por %p135, %p136
      %s139 = sadd.s32 %s138, 1
      %p142 = scmp.eq.s32.totalorder %s20, 1
      %p143 = scmp.ne.s32.totalorder %s138, %s140
      %p144 = scmp.eq.s32.totalorder %s20, 0
      %p145 = por %p143, %p144
      %p146 = scmp.ne.s32.totalorder %s138, %s140
      %p147 = scmp.eq.s32.totalorder %s25, 1
      %p148 = por %p146, %p147
      %p149 = scmp.ne.s32.totalorder %s140, %s141
      %p150 = scmp.eq.s32.totalorder %s25, 0
      %p151 = por %p149, %p150
      %p152 = scmp.ne.s32.totalorder %s140, %s141
      %p153 = scmp.eq.s32.totalorder %s26, 1
      %p154 = por %p152, %p153
      %p156 = scmp.ne.s32.totalorder %s141, %s155
      %p157 = scmp.eq.s32.totalorder %s26, 0
      %p158 = por %p156, %p157
      %s159 = ssub.s32 %s20, %s27
      %p160 = scmp.eq.s32.totalorder %s159, 0
      %s162 = sadd.s32 %s161, 1
      %s163 = scalar_select %p160, %s161, %s162
      %p166 = pneg %p160
      %p167 = scmp.eq.s32.totalorder %s20, 1
      %p168 = por %p166, %p167
      %p169 = scmp.ne.s32.totalorder %s161, %s164
      %p170 = scmp.eq.s32.totalorder %s20, 0
      %p171 = por %p169, %p170
      %p172 = scmp.ne.s32.totalorder %s161, %s164
      %p173 = scmp.eq.s32.totalorder %s25, 1
      %p174 = por %p172, %p173
      %p175 = scmp.ne.s32.totalorder %s164, %s165
      %p176 = scmp.eq.s32.totalorder %s25, 0
      %p177 = por %p175, %p176
      %p178 = scmp.ne.s32.totalorder %s164, %s165
      %p179 = scmp.eq.s32.totalorder %s26, 1
      %p180 = por %p178, %p179
      %p182 = scmp.ne.s32.totalorder %s165, %s181
      %p183 = scmp.eq.s32.totalorder %s26, 0
      %p184 = por %p182, %p183
      %p185 = scmp.le.s32.totalorder 1, %s20
      %p186 = scmp.lt.s32.totalorder %s20, 3
      %p187 = pnand %p185, %p186
      %p188 = pneg %p187
      // Predicated region
      $region9: #{tpu_custom_call.1} parent=5 // pred_check
        _
      $region10: #{tpu_custom_call.1} parent=5 // pred_check_branch
        %190 = sbr.rel (%p187) target = $region12
      $region11: #{tpu_custom_call.1} parent=5 // pred_region
        %s191 = ssub.s32 %s20, 1
        // Predicated region
        $region13: #{tpu_custom_call.1} parent=11 // pred_check
          %p192 = pneg %p67
        $region14: #{tpu_custom_call.1} parent=11 // pred_check_branch
          %194 = sbr.rel (%p192) target = $region16
        $region15: #{tpu_custom_call.1} parent=11 // pred_region
          %196 = vsyncadd [#allocation6], 0
          %s197 = sshll.u32 %s1, 4
          %s198 = int_to_ptr.hbm [resolvable:$true] %s197
          %s199 = sshll.u32 [#allocation5], 4
          %s200 = int_to_ptr.vmem [resolvable:$true] %s199
          %205 = dma.hbm_to_vmem [thread:$0]  %s198, 1024, %s200, [#allocation6], 64, 64, 4
        $region16: #{tpu_custom_call.1} parent=11 // pred_fallthru
          _
        // Predicated region
        $region17: #{tpu_custom_call.1} parent=11 // pred_check
          %p206 = pneg %p88
        $region18: #{tpu_custom_call.1} parent=11 // pred_check_branch
          %208 = sbr.rel (%p206) target = $region20
        $region19: #{tpu_custom_call.1} parent=11 // pred_region
          %210 = vsyncadd [#allocation6], 0
          %s211 = sshll.u32 %s2, 4
          %s212 = int_to_ptr.hbm [resolvable:$true] %s211
          %s213 = sshll.u32 [#allocation7], 4
          %s214 = int_to_ptr.vmem [resolvable:$true] %s213
          %219 = dma.hbm_to_vmem [thread:$0]  %s212, 1024, %s214, [#allocation6], 64, 64, 4
        $region20: #{tpu_custom_call.1} parent=11 // pred_fallthru
          _
        // Predicated region
        $region21: #{tpu_custom_call.1} parent=11 // pred_check
          %p220 = pneg %p109
        $region22: #{tpu_custom_call.1} parent=11 // pred_check_branch
          %222 = sbr.rel (%p220) target = $region24
        $region23: #{tpu_custom_call.1} parent=11 // pred_region
          %224 = vsyncadd [#allocation9], 0
          %s225 = sshll.u32 %s3, 4
          %s226 = int_to_ptr.hbm [resolvable:$true] %s225
          %s227 = sshll.u32 [#allocation8], 4
          %s228 = int_to_ptr.vmem [resolvable:$true] %s227
          %233 = dma.hbm_to_vmem [thread:$0]  %s226, 1024, %s228, [#allocation9], 64, 64, 4
        $region24: #{tpu_custom_call.1} parent=11 // pred_fallthru
          _
        // Predicated region
        $region25: #{tpu_custom_call.1} parent=11 // pred_check
          %p234 = pneg %p130
        $region26: #{tpu_custom_call.1} parent=11 // pred_check_branch
          %236 = sbr.rel (%p234) target = $region28
        $region27: #{tpu_custom_call.1} parent=11 // pred_region
          %238 = vsyncadd [#allocation9], 0
          %s239 = sshll.u32 %s4, 4
          %s240 = int_to_ptr.hbm [resolvable:$true] %s239
          %s241 = sshll.u32 [#allocation10], 4
          %s242 = int_to_ptr.vmem [resolvable:$true] %s241
          %247 = dma.hbm_to_vmem [thread:$0]  %s240, 1024, %s242, [#allocation9], 64, 64, 4
        $region28: #{tpu_custom_call.1} parent=11 // pred_fallthru
          _
        // Predicated region
        $region29: #{tpu_custom_call.1} parent=11 // pred_check
          %p248 = pneg %p151
        $region30: #{tpu_custom_call.1} parent=11 // pred_check_branch
          %250 = sbr.rel (%p248) target = $region32
        $region31: #{tpu_custom_call.1} parent=11 // pred_region
          _
        $region32: #{tpu_custom_call.1} parent=11 // pred_fallthru
          _
      $region12: #{tpu_custom_call.1} parent=5 // pred_fallthru
        _
      %p251 = scmp.lt.s32.totalorder %s20, 2
      // Predicated region
      $region33: #{tpu_custom_call.1} parent=5 // pred_check
        %p252 = pneg %p251
      $region34: #{tpu_custom_call.1} parent=5 // pred_check_branch
        %254 = sbr.rel (%p252) target = $region36
      $region35: #{tpu_custom_call.1} parent=5 // pred_region
        // Predicated region
        $region37: #{tpu_custom_call.1} parent=35 // pred_check
          %p255 = pneg %p40
        $region38: #{tpu_custom_call.1} parent=35 // pred_check_branch
          %257 = sbr.rel (%p255) target = $region40
        $region39: #{tpu_custom_call.1} parent=35 // pred_region
          %s258 = sand.u32 %s30, 1
          %s259 = scalar_lea.sflag [#allocation3], %s258
          %s260 = sand.u32 %s30, 1
          %s261 = smul.addr %s260, 32
          %s262 = scalar_lea.vmem [#allocation2], %s261
          %s263 = smul.u32 4, %s20
          %265 = vsyncadd %s259, 0
          %s266 = smul.addr %s263, 8
          %s267 = scalar_lea.hbm %s0, %s266
          %s268 = sshll.u32 %s267, 4
          %s269 = int_to_ptr.hbm [resolvable:$true] %s268
          %s270 = sshll.u32 %s262, 4
          %s271 = int_to_ptr.vmem [resolvable:$true] %s270
          %276 = dma.hbm_to_vmem [thread:$0]  %s269, 512, %s271, %s259, 128, 128, 8
        $region40: #{tpu_custom_call.1} parent=35 // pred_fallthru
          _
      $region36: #{tpu_custom_call.1} parent=5 // pred_fallthru
        _
      %p277 = scmp.le.s32.totalorder 1, %s20
      %p278 = scmp.lt.s32.totalorder %s20, 3
      %p279 = pnand %p277, %p278
      %p280 = pneg %p279
      // Predicated region
      $region41: #{tpu_custom_call.1} parent=5 // pred_check
        _
      $region42: #{tpu_custom_call.1} parent=5 // pred_check_branch
        %282 = sbr.rel (%p279) target = $region44
      $region43: #{tpu_custom_call.1} parent=5 // pred_region
        %s283 = ssub.s32 %s20, 1
        %s284 = sand.u32 %s33, 1
        %s285 = scalar_lea.sflag [#allocation3], %s284
        %s286 = sand.u32 %s33, 1
        %s287 = smul.addr %s286, 32
        %s288 = scalar_lea.vmem [#allocation2], %s287
        // Predicated region
        $region45: #{tpu_custom_call.1} parent=43 // pred_check
          %p289 = pneg %p46
        $region46: #{tpu_custom_call.1} parent=43 // pred_check_branch
          %291 = sbr.rel (%p289) target = $region48
        $region47: #{tpu_custom_call.1} parent=43 // pred_region
          %293 = dma.done %s285, 512
        $region48: #{tpu_custom_call.1} parent=43 // pred_fallthru
          _
        // Predicated region
        $region49: #{tpu_custom_call.1} parent=43 // pred_check
          %p294 = pneg %p67
        $region50: #{tpu_custom_call.1} parent=43 // pred_check_branch
          %296 = sbr.rel (%p294) target = $region52
        $region51: #{tpu_custom_call.1} parent=43 // pred_region
          %298 = dma.done [#allocation6], 1024
        $region52: #{tpu_custom_call.1} parent=43 // pred_fallthru
          _
        // Predicated region
        $region53: #{tpu_custom_call.1} parent=43 // pred_check
          %p299 = pneg %p88
        $region54: #{tpu_custom_call.1} parent=43 // pred_check_branch
          %301 = sbr.rel (%p299) target = $region56
        $region55: #{tpu_custom_call.1} parent=43 // pred_region
          %303 = dma.done [#allocation6], 1024
        $region56: #{tpu_custom_call.1} parent=43 // pred_fallthru
          _
        // Predicated region
        $region57: #{tpu_custom_call.1} parent=43 // pred_check
          %p304 = pneg %p109
        $region58: #{tpu_custom_call.1} parent=43 // pred_check_branch
          %306 = sbr.rel (%p304) target = $region60
        $region59: #{tpu_custom_call.1} parent=43 // pred_region
          %308 = dma.done [#allocation9], 1024
        $region60: #{tpu_custom_call.1} parent=43 // pred_fallthru
          _
        // Predicated region
        $region61: #{tpu_custom_call.1} parent=43 // pred_check
          %p309 = pneg %p130
        $region62: #{tpu_custom_call.1} parent=43 // pred_check_branch
          %311 = sbr.rel (%p309) target = $region64
        $region63: #{tpu_custom_call.1} parent=43 // pred_region
          %313 = dma.done [#allocation9], 1024
        $region64: #{tpu_custom_call.1} parent=43 // pred_fallthru
          _
        %s314 = sand.u32 %s33, 1
        %s315 = scalar_lea.sflag [#allocation3], %s314
        %s316 = sand.u32 %s33, 1
        %s317 = smul.addr %s316, 32
        %s318 = scalar_lea.vmem [#allocation2], %s317
        %p319 = pneg %p46
        %p320 = pneg %p43
        %p321 = pneg %p67
        %p322 = pneg %p64
        %p323 = pneg %p88
        %p324 = pneg %p85
        %p325 = pneg %p109
        %p326 = pneg %p106
        %p327 = pneg %p130
        %p328 = pneg %p127
        %p329 = pneg %p151
        %p330 = pneg %p148
        %p331 = pneg %p177
        %p332 = pneg %p174
        %s333 = sand.u32 %s164, 1
        %s334 = scalar_lea.sflag [#allocation4], %s333
        %s335 = sand.u32 %s164, 1
        %s336 = smul.addr %s335, 32
        %s337 = scalar_lea.vmem [#allocation11], %s336
        %s338 = smul.u32 4, %s25
        %s339 = smul.u32 4, %s25
        %v340 = vld [vmem:[%s5] sm:$0xf]
        %v341 = vld [vmem:[%s288] sm:$0xff]
        %v342 = vld [vmem:[%s288 + $0x8] sm:$0xff]
        %v343 = vld [vmem:[%s288 + $0x10] sm:$0xff]
        %v344 = vld [vmem:[%s288 + $0x18] sm:$0xff]
        %v345 = vtanh.pop %v341
        %v346 = vtanh.pop %v342
        %v347 = vtanh.pop %v343
        %v348 = vtanh.pop %v344
        %v349 = vpack.c.bf16 %v346, %v345
        %v350 = vpack.c.bf16 %v348, %v347
        %v351 = vld [vmem:[#allocation5] sm:$0xf]
        %v352 = vld [vmem:[#allocation5 + $0x4] sm:$0xf]
        %v353 = vld [vmem:[#allocation5 + $0x8] sm:$0xf]
        %v354 = vld [vmem:[#allocation5 + $0xc] sm:$0xf]
        %v355 = vld [vmem:[#allocation5 + $0x10] sm:$0xf]
        %v356 = vld [vmem:[#allocation5 + $0x14] sm:$0xf]
        %v357 = vld [vmem:[#allocation5 + $0x18] sm:$0xf]
        %v358 = vld [vmem:[#allocation5 + $0x1c] sm:$0xf]
        %v359 = vld [vmem:[#allocation5 + $0x20] sm:$0xf]
        %v360 = vld [vmem:[#allocation5 + $0x24] sm:$0xf]
        %v361 = vld [vmem:[#allocation5 + $0x28] sm:$0xf]
        %v362 = vld [vmem:[#allocation5 + $0x2c] sm:$0xf]
        %v363 = vld [vmem:[#allocation5 + $0x30] sm:$0xf]
        %v364 = vld [vmem:[#allocation5 + $0x34] sm:$0xf]
        %v365 = vld [vmem:[#allocation5 + $0x38] sm:$0xf]
        %v366 = vld [vmem:[#allocation5 + $0x3c] sm:$0xf]
        %v367 = vperm.slane %v340, 0
        %v384 = vunpack.c.l.b16 %v351
        %v385 = vunpack.c.l.b16 %v352
        %v386 = vunpack.c.l.b16 %v353
        %v387 = vunpack.c.l.b16 %v354
        %v388 = vunpack.c.l.b16 %v355
        %v389 = vunpack.c.l.b16 %v356
        %v390 = vunpack.c.l.b16 %v357
        %v391 = vunpack.c.l.b16 %v358
        %v392 = vunpack.c.l.b16 %v359
        %v393 = vunpack.c.l.b16 %v360
        %v394 = vunpack.c.l.b16 %v361
        %v395 = vunpack.c.l.b16 %v362
        %v396 = vunpack.c.l.b16 %v363
        %v397 = vunpack.c.l.b16 %v364
        %v398 = vunpack.c.l.b16 %v365
        %v399 = vunpack.c.l.b16 %v366
        %v400 = vpack.c.b16 %v385, %v384
        %v401 = vpack.c.b16 %v387, %v386
        %v402 = vpack.c.b16 %v389, %v388
        %v403 = vpack.c.b16 %v391, %v390
        %v404 = vpack.c.b16 %v393, %v392
        %v405 = vpack.c.b16 %v395, %v394
        %v406 = vpack.c.b16 %v397, %v396
        %v407 = vpack.c.b16 %v399, %v398
        %416 = vmatpush.bf16.msra.mxu0 %v407
        %417 = vmatpush.bf16.msra.mxu0 %v406
        %418 = vmatpush.bf16.msra.mxu0 %v405
        %419 = vmatpush.bf16.msra.mxu0 %v404
        %420 = vmatpush.bf16.msra.mxu0 %v403
        %421 = vmatpush.bf16.msra.mxu0 %v402
        %422 = vmatpush.bf16.msra.mxu0 %v401
        %423 = vmatpush.bf16.msra.mxu0 %v400
        %424 = vmatmul.bf16.gmra.mxu0 %v349
        %v425 = vpop.f32.mrf.mxu0
        %v426 = vadd.f32 %v367, %v425
        %v427 = vpop.f32.mrf.mxu0
        %v428 = vadd.f32 %v367, %v427
        %429 = vmatmul.bf16.gmra.mxu0 %v350
        %v430 = vpop.f32.mrf.mxu0
        %v431 = vadd.f32 %v367, %v430
        %v432 = vpop.f32.mrf.mxu0
        %v433 = vadd.f32 %v367, %v432
        %434 = vdwg.mxu0
        %v435 = vtanh.pop %v426
        %v436 = vtanh.pop %v428
        %v437 = vtanh.pop %v431
        %v438 = vtanh.pop %v433
        %v439 = vpack.c.bf16 %v436, %v435
        %v440 = vpack.c.bf16 %v438, %v437
        %v441 = vld [vmem:[#allocation7] sm:$0xf]
        %v442 = vld [vmem:[#allocation7 + $0x4] sm:$0xf]
        %v443 = vld [vmem:[#allocation7 + $0x8] sm:$0xf]
        %v444 = vld [vmem:[#allocation7 + $0xc] sm:$0xf]
        %v445 = vld [vmem:[#allocation7 + $0x10] sm:$0xf]
        %v446 = vld [vmem:[#allocation7 + $0x14] sm:$0xf]
        %v447 = vld [vmem:[#allocation7 + $0x18] sm:$0xf]
        %v448 = vld [vmem:[#allocation7 + $0x1c] sm:$0xf]
        %v449 = vld [vmem:[#allocation7 + $0x20] sm:$0xf]
        %v450 = vld [vmem:[#allocation7 + $0x24] sm:$0xf]
        %v451 = vld [vmem:[#allocation7 + $0x28] sm:$0xf]
        %v452 = vld [vmem:[#allocation7 + $0x2c] sm:$0xf]
        %v453 = vld [vmem:[#allocation7 + $0x30] sm:$0xf]
        %v454 = vld [vmem:[#allocation7 + $0x34] sm:$0xf]
        %v455 = vld [vmem:[#allocation7 + $0x38] sm:$0xf]
        %v456 = vld [vmem:[#allocation7 + $0x3c] sm:$0xf]
        %v457 = vperm.slane %v340, 1
        %v474 = vunpack.c.l.b16 %v441
        %v475 = vunpack.c.l.b16 %v442
        %v476 = vunpack.c.l.b16 %v443
        %v477 = vunpack.c.l.b16 %v444
        %v478 = vunpack.c.l.b16 %v445
        %v479 = vunpack.c.l.b16 %v446
        %v480 = vunpack.c.l.b16 %v447
        %v481 = vunpack.c.l.b16 %v448
        %v482 = vunpack.c.l.b16 %v449
        %v483 = vunpack.c.l.b16 %v450
        %v484 = vunpack.c.l.b16 %v451
        %v485 = vunpack.c.l.b16 %v452
        %v486 = vunpack.c.l.b16 %v453
        %v487 = vunpack.c.l.b16 %v454
        %v488 = vunpack.c.l.b16 %v455
        %v489 = vunpack.c.l.b16 %v456
        %v490 = vpack.c.b16 %v475, %v474
        %v491 = vpack.c.b16 %v477, %v476
        %v492 = vpack.c.b16 %v479, %v478
        %v493 = vpack.c.b16 %v481, %v480
        %v494 = vpack.c.b16 %v483, %v482
        %v495 = vpack.c.b16 %v485, %v484
        %v496 = vpack.c.b16 %v487, %v486
        %v497 = vpack.c.b16 %v489, %v488
        %506 = vmatpush.bf16.msra.mxu0 %v497
        %507 = vmatpush.bf16.msra.mxu0 %v496
        %508 = vmatpush.bf16.msra.mxu0 %v495
        %509 = vmatpush.bf16.msra.mxu0 %v494
        %510 = vmatpush.bf16.msra.mxu0 %v493
        %511 = vmatpush.bf16.msra.mxu0 %v492
        %512 = vmatpush.bf16.msra.mxu0 %v491
        %513 = vmatpush.bf16.msra.mxu0 %v490
        %514 = vmatmul.bf16.gmra.mxu0 %v439
        %v515 = vpop.f32.mrf.mxu0
        %v516 = vadd.f32 %v457, %v515
        %v517 = vpop.f32.mrf.mxu0
        %v518 = vadd.f32 %v457, %v517
        %519 = vmatmul.bf16.gmra.mxu0 %v440
        %v520 = vpop.f32.mrf.mxu0
        %v521 = vadd.f32 %v457, %v520
        %v522 = vpop.f32.mrf.mxu0
        %v523 = vadd.f32 %v457, %v522
        %524 = vdwg.mxu0
        %v525 = vtanh.pop %v516
        %v526 = vtanh.pop %v518
        %v527 = vtanh.pop %v521
        %v528 = vtanh.pop %v523
        %v529 = vpack.c.bf16 %v526, %v525
        %v530 = vpack.c.bf16 %v528, %v527
        %v531 = vld [vmem:[#allocation8] sm:$0xf]
        %v532 = vld [vmem:[#allocation8 + $0x4] sm:$0xf]
        %v533 = vld [vmem:[#allocation8 + $0x8] sm:$0xf]
        %v534 = vld [vmem:[#allocation8 + $0xc] sm:$0xf]
        %v535 = vld [vmem:[#allocation8 + $0x10] sm:$0xf]
        %v536 = vld [vmem:[#allocation8 + $0x14] sm:$0xf]
        %v537 = vld [vmem:[#allocation8 + $0x18] sm:$0xf]
        %v538 = vld [vmem:[#allocation8 + $0x1c] sm:$0xf]
        %v539 = vld [vmem:[#allocation8 + $0x20] sm:$0xf]
        %v540 = vld [vmem:[#allocation8 + $0x24] sm:$0xf]
        %v541 = vld [vmem:[#allocation8 + $0x28] sm:$0xf]
        %v542 = vld [vmem:[#allocation8 + $0x2c] sm:$0xf]
        %v543 = vld [vmem:[#allocation8 + $0x30] sm:$0xf]
        %v544 = vld [vmem:[#allocation8 + $0x34] sm:$0xf]
        %v545 = vld [vmem:[#allocation8 + $0x38] sm:$0xf]
        %v546 = vld [vmem:[#allocation8 + $0x3c] sm:$0xf]
        %v547 = vperm.slane %v340, 2
        %v564 = vunpack.c.l.b16 %v531
        %v565 = vunpack.c.l.b16 %v532
        %v566 = vunpack.c.l.b16 %v533
        %v567 = vunpack.c.l.b16 %v534
        %v568 = vunpack.c.l.b16 %v535
        %v569 = vunpack.c.l.b16 %v536
        %v570 = vunpack.c.l.b16 %v537
        %v571 = vunpack.c.l.b16 %v538
        %v572 = vunpack.c.l.b16 %v539
        %v573 = vunpack.c.l.b16 %v540
        %v574 = vunpack.c.l.b16 %v541
        %v575 = vunpack.c.l.b16 %v542
        %v576 = vunpack.c.l.b16 %v543
        %v577 = vunpack.c.l.b16 %v544
        %v578 = vunpack.c.l.b16 %v545
        %v579 = vunpack.c.l.b16 %v546
        %v580 = vpack.c.b16 %v565, %v564
        %v581 = vpack.c.b16 %v567, %v566
        %v582 = vpack.c.b16 %v569, %v568
        %v583 = vpack.c.b16 %v571, %v570
        %v584 = vpack.c.b16 %v573, %v572
        %v585 = vpack.c.b16 %v575, %v574
        %v586 = vpack.c.b16 %v577, %v576
        %v587 = vpack.c.b16 %v579, %v578
        %596 = vmatpush.bf16.msra.mxu0 %v587
        %597 = vmatpush.bf16.msra.mxu0 %v586
        %598 = vmatpush.bf16.msra.mxu0 %v585
        %599 = vmatpush.bf16.msra.mxu0 %v584
        %600 = vmatpush.bf16.msra.mxu0 %v583
        %601 = vmatpush.bf16.msra.mxu0 %v582
        %602 = vmatpush.bf16.msra.mxu0 %v581
        %603 = vmatpush.bf16.msra.mxu0 %v580
        %604 = vmatmul.bf16.gmra.mxu0 %v529
        %v605 = vpop.f32.mrf.mxu0
        %v606 = vadd.f32 %v547, %v605
        %v607 = vpop.f32.mrf.mxu0
        %v608 = vadd.f32 %v547, %v607
        %609 = vmatmul.bf16.gmra.mxu0 %v530
        %v610 = vpop.f32.mrf.mxu0
        %v611 = vadd.f32 %v547, %v610
        %v612 = vpop.f32.mrf.mxu0
        %v613 = vadd.f32 %v547, %v612
        %614 = vdwg.mxu0
        %v615 = vpack.c.bf16 %v608, %v606
        %v616 = vpack.c.bf16 %v613, %v611
        %v617 = vld [vmem:[#allocation10] sm:$0xf]
        %v618 = vld [vmem:[#allocation10 + $0x4] sm:$0xf]
        %v619 = vld [vmem:[#allocation10 + $0x8] sm:$0xf]
        %v620 = vld [vmem:[#allocation10 + $0xc] sm:$0xf]
        %v621 = vld [vmem:[#allocation10 + $0x10] sm:$0xf]
        %v622 = vld [vmem:[#allocation10 + $0x14] sm:$0xf]
        %v623 = vld [vmem:[#allocation10 + $0x18] sm:$0xf]
        %v624 = vld [vmem:[#allocation10 + $0x1c] sm:$0xf]
        %v625 = vld [vmem:[#allocation10 + $0x20] sm:$0xf]
        %v626 = vld [vmem:[#allocation10 + $0x24] sm:$0xf]
        %v627 = vld [vmem:[#allocation10 + $0x28] sm:$0xf]
        %v628 = vld [vmem:[#allocation10 + $0x2c] sm:$0xf]
        %v629 = vld [vmem:[#allocation10 + $0x30] sm:$0xf]
        %v630 = vld [vmem:[#allocation10 + $0x34] sm:$0xf]
        %v631 = vld [vmem:[#allocation10 + $0x38] sm:$0xf]
        %v632 = vld [vmem:[#allocation10 + $0x3c] sm:$0xf]
        %v633 = vperm.slane %v340, 3
        %v650 = vunpack.c.l.b16 %v617
        %v651 = vunpack.c.l.b16 %v618
        %v652 = vunpack.c.l.b16 %v619
        %v653 = vunpack.c.l.b16 %v620
        %v654 = vunpack.c.l.b16 %v621
        %v655 = vunpack.c.l.b16 %v622
        %v656 = vunpack.c.l.b16 %v623
        %v657 = vunpack.c.l.b16 %v624
        %v658 = vunpack.c.l.b16 %v625
        %v659 = vunpack.c.l.b16 %v626
        %v660 = vunpack.c.l.b16 %v627
        %v661 = vunpack.c.l.b16 %v628
        %v662 = vunpack.c.l.b16 %v629
        %v663 = vunpack.c.l.b16 %v630
        %v664 = vunpack.c.l.b16 %v631
        %v665 = vunpack.c.l.b16 %v632
        %v666 = vpack.c.b16 %v651, %v650
        %v667 = vpack.c.b16 %v653, %v652
        %v668 = vpack.c.b16 %v655, %v654
        %v669 = vpack.c.b16 %v657, %v656
        %v670 = vpack.c.b16 %v659, %v658
        %v671 = vpack.c.b16 %v661, %v660
        %v672 = vpack.c.b16 %v663, %v662
        %v673 = vpack.c.b16 %v665, %v664
        %682 = vmatpush.bf16.msra.mxu0 %v673
        %683 = vmatpush.bf16.msra.mxu0 %v672
        %684 = vmatpush.bf16.msra.mxu0 %v671
        %685 = vmatpush.bf16.msra.mxu0 %v670
        %686 = vmatpush.bf16.msra.mxu0 %v669
        %687 = vmatpush.bf16.msra.mxu0 %v668
        %688 = vmatpush.bf16.msra.mxu0 %v667
        %689 = vmatpush.bf16.msra.mxu0 %v666
        %690 = vmatmul.bf16.gmra.mxu0 %v615
        %v691 = vpop.f32.mrf.mxu0
        %v692 = vadd.f32 %v633, %v691
        %v693 = vpop.f32.mrf.mxu0
        %v694 = vadd.f32 %v633, %v693
        %695 = vmatmul.bf16.gmra.mxu0 %v616
        %v696 = vpop.f32.mrf.mxu0
        %v697 = vadd.f32 %v633, %v696
        %v698 = vpop.f32.mrf.mxu0
        %v699 = vadd.f32 %v633, %v698
        %700 = vdwg.mxu0
        %701 = vst [vmem:[%s337] sm:$0xff] %v692
        %702 = vst [vmem:[%s337 + $0x8] sm:$0xff] %v694
        %703 = vst [vmem:[%s337 + $0x10] sm:$0xff] %v697
        %704 = vst [vmem:[%s337 + $0x18] sm:$0xff] %v699
        %s705 = sand.u32 %s164, 1
        %s706 = scalar_lea.sflag [#allocation4], %s705
        %s707 = sand.u32 %s164, 1
        %s708 = smul.addr %s707, 32
        %s709 = scalar_lea.vmem [#allocation11], %s708
        // Predicated region
        $region65: #{tpu_custom_call.1} parent=43 // pred_check
          %p710 = pneg %p174
        $region66: #{tpu_custom_call.1} parent=43 // pred_check_branch
          %712 = sbr.rel (%p710) target = $region68
        $region67: #{tpu_custom_call.1} parent=43 // pred_region
          %s713 = smul.u32 4, %s25
          %715 = vsyncadd %s706, 0
          %s716 = smul.addr %s713, 8
          %s717 = scalar_lea.hbm %s6, %s716
          %s718 = sshll.u32 %s709, 4
          %s719 = int_to_ptr.vmem [resolvable:$true] %s718
          %s720 = sshll.u32 %s717, 4
          %s721 = int_to_ptr.hbm [resolvable:$true] %s720
          %726 = dma.vmem_to_hbm [thread:$0]  %s719, 512, %s721, %s706, 128, 128, 8
        $region68: #{tpu_custom_call.1} parent=43 // pred_fallthru
          _
      $region44: #{tpu_custom_call.1} parent=5 // pred_fallthru
        _
      %p727 = scmp.le.s32.totalorder 2, %s20
      // Predicated region
      $region69: #{tpu_custom_call.1} parent=5 // pred_check
        %p728 = pneg %p727
      $region70: #{tpu_custom_call.1} parent=5 // pred_check_branch
        %730 = sbr.rel (%p728) target = $region72
      $region71: #{tpu_custom_call.1} parent=5 // pred_region
        %s731 = ssub.s32 %s20, 2
        // Predicated region
        $region73: #{tpu_custom_call.1} parent=71 // pred_check
          %p732 = pneg %p180
        $region74: #{tpu_custom_call.1} parent=71 // pred_check_branch
          %734 = sbr.rel (%p732) target = $region76
        $region75: #{tpu_custom_call.1} parent=71 // pred_region
          %s735 = sand.u32 %s165, 1
          %s736 = scalar_lea.sflag [#allocation4], %s735
          %s737 = sand.u32 %s165, 1
          %s738 = smul.addr %s737, 32
          %s739 = scalar_lea.vmem [#allocation11], %s738
          %741 = dma.done %s736, 512
        $region76: #{tpu_custom_call.1} parent=71 // pred_fallthru
          _
      $region72: #{tpu_custom_call.1} parent=5 // pred_fallthru
        _
    $region6: #{tpu_custom_call.1} parent=1 // loop_footer
      %s24 = sadd.s32 1, %s20
    $region7: #{tpu_custom_call.1} parent=1 // loop_footer_branch
      %19 = sbr.rel target = $region3
    $region8: #{tpu_custom_call.1} parent=1 // loop_exit
      _
    %742 = vsyncpa [#allocation3], 1
    %s743 = scalar_lea.sflag [#allocation3], 1
    %744 = vsyncpa %s743, 1
    %745 = vsyncpa [#allocation6], 1
    %746 = vsyncpa [#allocation9], 1
    %747 = vsyncpa [#allocation4], 1
    %s748 = scalar_lea.sflag [#allocation4], 1
    %749 = vsyncpa %s748, 1

</llo_original>
